<compile_context>
chip_gen: v7x
topology: tpu7x:2x2x1
jax: 0.10.0
libtpu: 0.0.40
codegen_flags: <defaults>
</compile_context>

<pallas_src>
import functools

import jax
import jax.numpy as jnp
from jax.experimental import pallas as pl
from jax.experimental.pallas import tpu as pltpu


def _round_up(x, m):
    return (x + m - 1) // m * m


def _pad2(a, rows, cols, dtype):
    out = jnp.zeros((rows, cols), dtype)
    return out.at[:a.shape[0], :a.shape[1]].set(a.astype(dtype))


def _make_mlp_kernel(h1_p, h2_p, out_p):
    """Fused 3-layer MLP kernel with static padded widths."""

    def mlp_kernel(x_ref, w1_ref, w2_ref, w3_ref, bias_ref, o_ref):
        # Concatenated f32 biases along the lane axis: [b1 | b2 | b3].
        b1 = bias_ref[:, 0:h1_p]
        b2 = bias_ref[:, h1_p:h1_p + h2_p]
        b3 = bias_ref[:, h1_p + h2_p:h1_p + h2_p + out_p]

        # x may arrive as f32 (aligned fast path) or bf16 (padded path).
        x = x_ref[...].astype(jnp.bfloat16)

        # Layer 1: bf16 MXU matmul, f32 accumulate; bias + ReLU in f32 (VPU).
        h1 = jnp.dot(x, w1_ref[...], preferred_element_type=jnp.float32)
        h1 = jnp.maximum(h1 + b1, 0.0)

        # Layer 2.
        h2 = jnp.dot(h1.astype(jnp.bfloat16), w2_ref[...],
                     preferred_element_type=jnp.float32)
        h2 = jnp.maximum(h2 + b2, 0.0)

        # Layer 3 (no activation); store bf16 to halve output HBM writeback.
        out = jnp.dot(h2.astype(jnp.bfloat16), w3_ref[...],
                      preferred_element_type=jnp.float32)
        o_ref[...] = (out + b3).astype(o_ref.dtype)

    return mlp_kernel


def prepare_params(params):
    """One-time weight preparation (hoisted out of the per-call hot path).

    Pads every feature dim to a 128-lane multiple (exact: zero padding),
    casts weights to bf16 for the MXU, and concatenates the three biases
    into a single f32 slab (one resident DMA stream instead of three).
    """
    w1, b1 = params["w1"], params["b1"]
    w2, b2 = params["w2"], params["b2"]
    w3, b3 = params["w3"], params["b3"]

    in_p = _round_up(w1.shape[0], 128)
    h1_p = _round_up(w1.shape[1], 128)
    h2_p = _round_up(w2.shape[1], 128)
    out_p = _round_up(w3.shape[1], 128)

    bf16, f32 = jnp.bfloat16, jnp.float32
    return {
        "w1": _pad2(w1, in_p, h1_p, bf16),
        "w2": _pad2(w2, h1_p, h2_p, bf16),
        "w3": _pad2(w3, h2_p, out_p, bf16),
        "bias": jnp.concatenate(
            [_pad2(b1, 1, h1_p, f32),
             _pad2(b2, 1, h2_p, f32),
             _pad2(b3, 1, out_p, f32)], axis=1),
    }


def neural_net_forward(x, padded_params, out_size, block_batch=1024):
    """x: (B, input_size) f32. padded_params: output of prepare_params.
    Returns (B, out_size) f32."""
    w1p, w2p, w3p = padded_params["w1"], padded_params["w2"], padded_params["w3"]
    bias = padded_params["bias"]

    B, in_size = x.shape
    in_p, h1_p = w1p.shape
    h2_p = w2p.shape[1]
    out_p = w3p.shape[1]

    # Batch tile: multiple of 16 (bf16 sublane packing). Prefer at least 2
    # grid steps so the "parallel" batch axis can shard across v7x's 2 TCs.
    block_batch = max(16, _round_up(block_batch, 16))
    tb = min(block_batch, _round_up(max(pl.cdiv(B, 2), 1), 16))
    b_pad = _round_up(B, tb)
    grid = (b_pad // tb,)

    # Alignment fast path: skip the explicit pad/cast pass when x already
    # matches the tiled shape; the kernel casts to bf16 internally.
    if B == b_pad and in_size == in_p:
        xp = x
    else:
        xp = jnp.zeros((b_pad, in_p), jnp.bfloat16).at[:B, :in_size].set(
            x.astype(jnp.bfloat16))

    # VMEM footprint estimate; only raise the scoped limit when it matters
    # (v5e's default scoped VMEM is 16 MiB even though physical is 128 MiB).
    x_bytes = tb * in_p * xp.dtype.itemsize
    out_bytes = tb * out_p * 2                       # bf16 output tile
    weight_bytes = ((in_p * h1_p + h1_p * h2_p + h2_p * out_p) * 2
                    + (h1_p + h2_p + out_p) * 4)     # single-buffered residents
    act_bytes = tb * (h1_p + h2_p) * 4               # f32 intermediates
    est_vmem = 2 * (x_bytes + out_bytes) + weight_bytes + act_bytes
    cp_kwargs = dict(dimension_semantics=("parallel",))
    if est_vmem > 16 * 1024 * 1024:
        # Keep <= 64 MiB so the same config also lowers on v7x (64 MiB physical).
        cp_kwargs["vmem_limit_bytes"] = min(int(est_vmem * 1.5), 64 * 1024 * 1024)

    kernel = _make_mlp_kernel(h1_p, h2_p, out_p)

    def resident(shape):
        # Constant-index blocks stay VMEM-resident across the whole grid;
        # single-buffer them so they don't pay the default 2x VMEM footprint.
        return pl.BlockSpec(shape, lambda i: (0, 0),
                            pipeline_mode=pl.Buffered(1))

    out_padded = pl.pallas_call(
        kernel,
        out_shape=jax.ShapeDtypeStruct((b_pad, out_p), jnp.bfloat16),
        grid=grid,
        in_specs=[
            pl.BlockSpec((tb, in_p), lambda i: (i, 0)),   # x tile, pipelined
            resident(w1p.shape),
            resident(w2p.shape),
            resident(w3p.shape),
            resident(bias.shape),
        ],
        out_specs=pl.BlockSpec((tb, out_p), lambda i: (i, 0)),
        compiler_params=pltpu.CompilerParams(**cp_kwargs),
    )(xp, w1p, w2p, w3p, bias)

    # Slice away batch / lane padding (skipped when already aligned).
    if B == b_pad and out_size == out_p:
        return out_padded.astype(jnp.float32)
    return out_padded[:B, :out_size].astype(jnp.float32)


def init_params(key, input_size, hidden_1, hidden_2, output_size):
    """Deterministic PyTorch-style init: U(-1/sqrt(fan_in), 1/sqrt(fan_in))."""
    ks = jax.random.split(key, 6)

    def lin(kw, kb, fan_in, fan_out):
        bound = 1.0 / jnp.sqrt(fan_in)
        w = jax.random.uniform(kw, (fan_in, fan_out), jnp.float32, -bound, bound)
        b = jax.random.uniform(kb, (1, fan_out), jnp.float32, -bound, bound)
        return w, b

    w1, b1 = lin(ks[0], ks[1], input_size, hidden_1)
    w2, b2 = lin(ks[2], ks[3], hidden_1, hidden_2)
    w3, b3 = lin(ks[4], ks[5], hidden_2, output_size)
    return {"w1": w1, "b1": b1, "w2": w2, "b2": b2, "w3": w3, "b3": b3}


if __name__ == "__main__":
    input_size, hidden_1, hidden_2, output_size = 32, 64, 48, 8
    batch = 8

    key = jax.random.PRNGKey(0)
    kx, kp = jax.random.split(key)
    x = jax.random.normal(kx, (batch, input_size), jnp.float32)
    params = init_params(kp, input_size, hidden_1, hidden_2, output_size)

    # One-time weight prep (padding + bf16 cast) outside the per-call hot path.
    padded = prepare_params(params)

    fwd = jax.jit(functools.partial(neural_net_forward,
                                    out_size=output_size, block_batch=1024))
    out = jax.block_until_ready(fwd(x, padded))

    # Reference in plain JAX, mirroring the kernel's bf16-into-MXU numerics
    # (including the final bf16 output store).
    bf = lambda a: a.astype(jnp.bfloat16)
    f32 = lambda a: a.astype(jnp.float32)
    h1 = jnp.maximum(f32(bf(x)) @ f32(bf(params["w1"])) + params["b1"], 0.0)
    h2 = jnp.maximum(f32(bf(h1)) @ f32(bf(params["w2"])) + params["b2"], 0.0)
    ref = f32(bf(f32(bf(h2)) @ f32(bf(params["w3"])) + params["b3"]))

    assert out.shape == (batch, output_size)
    assert jnp.allclose(out, ref, atol=2e-2, rtol=2e-2), \
        float(jnp.max(jnp.abs(out - ref)))

    print("KERNEL_OK")
</pallas_src>

<mosaic_0001>
module attributes {stable_mosaic.version = 11 : i64} {
  func.func @mlp_kernel(%arg0: i32, %arg1: memref<16x128xbf16, #tpu.memory_space<vmem>>, %arg2: memref<128x128xbf16, #tpu.memory_space<vmem>>, %arg3: memref<128x128xbf16, #tpu.memory_space<vmem>>, %arg4: memref<128x128xbf16, #tpu.memory_space<vmem>>, %arg5: memref<1x384xf32, #tpu.memory_space<vmem>>, %arg6: memref<16x128xbf16, #tpu.memory_space<vmem>>) attributes {dimension_semantics = [#tpu.dimension_semantics<parallel>], iteration_bounds = array<i64: 1>, scalar_prefetch = 0 : i64, scratch_operands = 0 : i64, tpu.core_type = #tpu.core_type<tc>, window_params = [{transform_indices = @transform_0, window_bounds = array<i64: 16, 128>}, {pipeline_mode = #tpu.pipeline_mode<synchronous>, transform_indices = @transform_1, window_bounds = array<i64: 128, 128>}, {pipeline_mode = #tpu.pipeline_mode<synchronous>, transform_indices = @transform_2, window_bounds = array<i64: 128, 128>}, {pipeline_mode = #tpu.pipeline_mode<synchronous>, transform_indices = @transform_3, window_bounds = array<i64: 128, 128>}, {pipeline_mode = #tpu.pipeline_mode<synchronous>, transform_indices = @transform_4, window_bounds = array<i64: 1, 384>}, {transform_indices = @transform_5, window_bounds = array<i64: 16, 128>}]} {
    %c0 = arith.constant 0 : index
    %c0_0 = arith.constant 0 : index
    %0 = vector.load %arg5[%c0, %c0_0] : memref<1x384xf32, #tpu.memory_space<vmem>>, vector<1x128xf32>
    %c0_1 = arith.constant 0 : index
    %c128 = arith.constant 128 : index
    %1 = vector.load %arg5[%c0_1, %c128] : memref<1x384xf32, #tpu.memory_space<vmem>>, vector<1x128xf32>
    %c0_2 = arith.constant 0 : index
    %c256 = arith.constant 256 : index
    %2 = vector.load %arg5[%c0_2, %c256] : memref<1x384xf32, #tpu.memory_space<vmem>>, vector<1x128xf32>
    %c0_3 = arith.constant 0 : index
    %c0_4 = arith.constant 0 : index
    %3 = vector.load %arg1[%c0_3, %c0_4] : memref<16x128xbf16, #tpu.memory_space<vmem>>, vector<16x128xbf16>
    %c0_5 = arith.constant 0 : index
    %c0_6 = arith.constant 0 : index
    %4 = vector.load %arg2[%c0_5, %c0_6] : memref<128x128xbf16, #tpu.memory_space<vmem>>, vector<128x128xbf16>
    %cst = arith.constant dense<0.000000e+00> : vector<16x128xf32>
    %5 = tpu.matmul %3, %4, %cst {dimension_numbers = #tpu.dot_dimension_numbers<[1], [0], [0], [1], [0, 0, 1, 1], [], []>} : vector<16x128xbf16>, vector<128x128xbf16>, vector<16x128xf32> -> vector<16x128xf32>
    %6 = vector.broadcast %0 : vector<1x128xf32> to vector<16x128xf32>
    %7 = arith.addf %5, %6 : vector<16x128xf32>
    %cst_7 = arith.constant 0.000000e+00 : f32
    %8 = vector.broadcast %cst_7 : f32 to vector<16x128xf32>
    %9 = arith.maximumf %7, %8 : vector<16x128xf32>
    %10 = arith.truncf %9 : vector<16x128xf32> to vector<16x128xbf16>
    %c0_8 = arith.constant 0 : index
    %c0_9 = arith.constant 0 : index
    %11 = vector.load %arg3[%c0_8, %c0_9] : memref<128x128xbf16, #tpu.memory_space<vmem>>, vector<128x128xbf16>
    %cst_10 = arith.constant dense<0.000000e+00> : vector<16x128xf32>
    %12 = tpu.matmul %10, %11, %cst_10 {dimension_numbers = #tpu.dot_dimension_numbers<[1], [0], [0], [1], [0, 0, 1, 1], [], []>} : vector<16x128xbf16>, vector<128x128xbf16>, vector<16x128xf32> -> vector<16x128xf32>
    %13 = vector.broadcast %1 : vector<1x128xf32> to vector<16x128xf32>
    %14 = arith.addf %12, %13 : vector<16x128xf32>
    %cst_11 = arith.constant 0.000000e+00 : f32
    %15 = vector.broadcast %cst_11 : f32 to vector<16x128xf32>
    %16 = arith.maximumf %14, %15 : vector<16x128xf32>
    %17 = arith.truncf %16 : vector<16x128xf32> to vector<16x128xbf16>
    %c0_12 = arith.constant 0 : index
    %c0_13 = arith.constant 0 : index
    %18 = vector.load %arg4[%c0_12, %c0_13] : memref<128x128xbf16, #tpu.memory_space<vmem>>, vector<128x128xbf16>
    %cst_14 = arith.constant dense<0.000000e+00> : vector<16x128xf32>
    %19 = tpu.matmul %17, %18, %cst_14 {dimension_numbers = #tpu.dot_dimension_numbers<[1], [0], [0], [1], [0, 0, 1, 1], [], []>} : vector<16x128xbf16>, vector<128x128xbf16>, vector<16x128xf32> -> vector<16x128xf32>
    %20 = vector.broadcast %2 : vector<1x128xf32> to vector<16x128xf32>
    %21 = arith.addf %19, %20 : vector<16x128xf32>
    %22 = arith.truncf %21 : vector<16x128xf32> to vector<16x128xbf16>
    %c0_15 = arith.constant 0 : index
    %c0_16 = arith.constant 0 : index
    %23 = vector.load %arg6[%c0_15, %c0_16] : memref<16x128xbf16, #tpu.memory_space<vmem>>, vector<16x128xbf16>
    tpu.vector_store %arg6[%c0_15, %c0_16], %22 {strides = array<i32>} : memref<16x128xbf16, #tpu.memory_space<vmem>>, vector<16x128xbf16>,
    return
  }
  func.func @transform_0(%arg0: i32) -> (i32, i32) {
    %c0_i32 = arith.constant 0 : i32
    %c0_i32_0 = arith.constant 0 : i32
    return %arg0, %c0_i32 : i32, i32
  }
  func.func @transform_1(%arg0: i32) -> (i32, i32) {
    %c0_i32 = arith.constant 0 : i32
    %c0_i32_0 = arith.constant 0 : i32
    %c0_i32_1 = arith.constant 0 : i32
    return %c0_i32, %c0_i32_0 : i32, i32
  }
  func.func @transform_2(%arg0: i32) -> (i32, i32) {
    %c0_i32 = arith.constant 0 : i32
    %c0_i32_0 = arith.constant 0 : i32
    %c0_i32_1 = arith.constant 0 : i32
    return %c0_i32, %c0_i32_0 : i32, i32
  }
  func.func @transform_3(%arg0: i32) -> (i32, i32) {
    %c0_i32 = arith.constant 0 : i32
    %c0_i32_0 = arith.constant 0 : i32
    %c0_i32_1 = arith.constant 0 : i32
    return %c0_i32, %c0_i32_0 : i32, i32
  }
  func.func @transform_4(%arg0: i32) -> (i32, i32) {
    %c0_i32 = arith.constant 0 : i32
    %c0_i32_0 = arith.constant 0 : i32
    %c0_i32_1 = arith.constant 0 : i32
    return %c0_i32, %c0_i32_0 : i32, i32
  }
  func.func @transform_5(%arg0: i32) -> (i32, i32) {
    %c0_i32 = arith.constant 0 : i32
    %c0_i32_0 = arith.constant 0 : i32
    return %arg0, %c0_i32 : i32, i32
  }
}

</mosaic_0001>

<llo_original>
// kernel: neural_net_forward.1
$region0: #{neural_net_forward.1}
  #allocation0 [shape = 'u32[]', space=smem, size = 0x4, offset = 0x4, fixed_abs, tag = 'smem constant byte address 0x4 - core index']
  #allocation1 [shape = 'u32[144,128]{1,0:T(1,128)}', space=vmem, size = 0x12000, scoped, tag = 'internal scratch']
  %s0 = inlined_call_operand.vmem [shape: bf16[16,128], index: 0, kind: input, shape index: {}]
  %s1 = inlined_call_operand.hbm [shape: bf16[128,128], index: 1, kind: input, shape index: {}]
  %s2 = inlined_call_operand.hbm [shape: bf16[128,128], index: 2, kind: input, shape index: {}]
  %s3 = inlined_call_operand.hbm [shape: bf16[128,128], index: 3, kind: input, shape index: {}]
  %s4 = inlined_call_operand.vmem [shape: f32[1,384], index: 4, kind: input, shape index: {}]
  %s5 = inlined_call_operand.vmem [shape: bf16[16,128], index: 5, kind: output, shape index: {}]
  %s6 = sld [smem:[#allocation0]]
  $region42: #{neural_net_forward.1} parent=0
    _
  %s8 = ssub.s32 1, %s6
  %s9 = scalar_select 0, %s8, %s6
  $region1: #{neural_net_forward.1} parent=0
    #allocation2 [shape = 'u8[32768]{0}', space=vmem, size = 0x8000, scoped, tag = 'input window, operand 1, single buffered']
    #allocation3 [shape = 's32[1]{0}', space=sflag, size = 0x4, scoped, tag = 'scoped memory for neural_net_forward.1']
    #allocation4 [shape = 'u8[32768]{0}', space=vmem, size = 0x8000, scoped, tag = 'input window, operand 2, single buffered']
    #allocation5 [shape = 's32[1]{0}', space=sflag, size = 0x4, scoped, tag = 'scoped memory for neural_net_forward.1']
    #allocation6 [shape = 'u8[32768]{0}', space=vmem, size = 0x8000, scoped, tag = 'input window, operand 3, single buffered']
    %10 = vsyncpa [#allocation3], 0
    %11 = vsyncpa [#allocation5], 0
    // Predicated region
    $region2: #{neural_net_forward.1} parent=1 // pred_check
      _
    $region3: #{neural_net_forward.1} parent=1 // pred_check_branch
      %13 = sbr.rel (0) target = $region5
    $region4: #{neural_net_forward.1} parent=1 // pred_region
      _
    $region5: #{neural_net_forward.1} parent=1 // pred_fallthru
      _
    // Predicated region
    $region6: #{neural_net_forward.1} parent=1 // pred_check
      _
    $region7: #{neural_net_forward.1} parent=1 // pred_check_branch
      %15 = sbr.rel (0) target = $region9
    $region8: #{neural_net_forward.1} parent=1 // pred_region
      %s17 = ssub.s32 1024, 1024
      %18 = vsyncadd [#allocation3], %s17
      %s19 = sshll.u32 [#allocation2], 4
      %s20 = int_to_ptr.vmem [resolvable:$true] %s19
      %25 = dma.hbm_to_vmem [thread:$0]  %s1, 1024, %s20, [#allocation3], 64, 64, 4
    $region9: #{neural_net_forward.1} parent=1 // pred_fallthru
      _
    // Predicated region
    $region10: #{neural_net_forward.1} parent=1 // pred_check
      _
    $region11: #{neural_net_forward.1} parent=1 // pred_check_branch
      %27 = sbr.rel (0) target = $region13
    $region12: #{neural_net_forward.1} parent=1 // pred_region
      %s29 = ssub.s32 1024, 1024
      %30 = vsyncadd [#allocation5], %s29
      %s31 = sshll.u32 [#allocation4], 4
      %s32 = int_to_ptr.vmem [resolvable:$true] %s31
      %37 = dma.hbm_to_vmem [thread:$0]  %s2, 1024, %s32, [#allocation5], 64, 64, 4
    $region13: #{neural_net_forward.1} parent=1 // pred_fallthru
      _
    // Predicated region
    $region14: #{neural_net_forward.1} parent=1 // pred_check
      _
    $region15: #{neural_net_forward.1} parent=1 // pred_check_branch
      %39 = sbr.rel (0) target = $region17
    $region16: #{neural_net_forward.1} parent=1 // pred_region
      %s41 = ssub.s32 1024, 1024
      %42 = vsyncadd [#allocation5], %s41
      %s43 = sshll.u32 [#allocation6], 4
      %s44 = int_to_ptr.vmem [resolvable:$true] %s43
      %49 = dma.hbm_to_vmem [thread:$0]  %s3, 1024, %s44, [#allocation5], 64, 64, 4
    $region17: #{neural_net_forward.1} parent=1 // pred_fallthru
      _
    // Predicated region
    $region18: #{neural_net_forward.1} parent=1 // pred_check
      _
    $region19: #{neural_net_forward.1} parent=1 // pred_check_branch
      %51 = sbr.rel (0) target = $region21
    $region20: #{neural_net_forward.1} parent=1 // pred_region
      _
    $region21: #{neural_net_forward.1} parent=1 // pred_fallthru
      _
    // Predicated region
    $region22: #{neural_net_forward.1} parent=1 // pred_check
      _
    $region23: #{neural_net_forward.1} parent=1 // pred_check_branch
      %53 = sbr.rel (0) target = $region25
    $region24: #{neural_net_forward.1} parent=1 // pred_region
      %54 = dma.done [#allocation3], 1024
    $region25: #{neural_net_forward.1} parent=1 // pred_fallthru
      _
    // Predicated region
    $region26: #{neural_net_forward.1} parent=1 // pred_check
      _
    $region27: #{neural_net_forward.1} parent=1 // pred_check_branch
      %56 = sbr.rel (0) target = $region29
    $region28: #{neural_net_forward.1} parent=1 // pred_region
      %57 = dma.done [#allocation5], 1024
    $region29: #{neural_net_forward.1} parent=1 // pred_fallthru
      _
    // Predicated region
    $region30: #{neural_net_forward.1} parent=1 // pred_check
      _
    $region31: #{neural_net_forward.1} parent=1 // pred_check_branch
      %59 = sbr.rel (0) target = $region33
    $region32: #{neural_net_forward.1} parent=1 // pred_region
      %60 = dma.done [#allocation5], 1024
    $region33: #{neural_net_forward.1} parent=1 // pred_fallthru
      _
    %v62 = vld [vmem:[%s4] sm:$0x1]
    %v63 = vld [vmem:[%s4 + $0x1] sm:$0x1]
    %v64 = vld [vmem:[%s4 + $0x2] sm:$0x1]
    %v65 = vld [vmem:[%s0] sm:$0xf]
    %v66 = vld [vmem:[%s0 + $0x4] sm:$0xf]
    %v67 = vld [vmem:[#allocation2] sm:$0xf]
    %v68 = vld [vmem:[#allocation2 + $0x4] sm:$0xf]
    %v69 = vld [vmem:[#allocation2 + $0x8] sm:$0xf]
    %v70 = vld [vmem:[#allocation2 + $0xc] sm:$0xf]
    %v71 = vld [vmem:[#allocation2 + $0x10] sm:$0xf]
    %v72 = vld [vmem:[#allocation2 + $0x14] sm:$0xf]
    %v73 = vld [vmem:[#allocation2 + $0x18] sm:$0xf]
    %v74 = vld [vmem:[#allocation2 + $0x1c] sm:$0xf]
    %v75 = vld [vmem:[#allocation2 + $0x20] sm:$0xf]
    %v76 = vld [vmem:[#allocation2 + $0x24] sm:$0xf]
    %v77 = vld [vmem:[#allocation2 + $0x28] sm:$0xf]
    %v78 = vld [vmem:[#allocation2 + $0x2c] sm:$0xf]
    %v79 = vld [vmem:[#allocation2 + $0x30] sm:$0xf]
    %v80 = vld [vmem:[#allocation2 + $0x34] sm:$0xf]
    %v81 = vld [vmem:[#allocation2 + $0x38] sm:$0xf]
    %v82 = vld [vmem:[#allocation2 + $0x3c] sm:$0xf]
    %v84 = vlaneseq
    %v85 = vshrl.u32 %v84, 7
    %v86 = vsub.s32 0, %v85
    %v87 = vrot.slane %v62, %v86
    %v91 = vunpack.c.l.b16 %v65
    %v92 = vunpack.c.l.b16 %v66
    %v93 = vpack.c.b16 %v92, %v91
    %v111 = vunpack.c.l.b16 %v67
    %v112 = vunpack.c.l.b16 %v68
    %v113 = vunpack.c.l.b16 %v69
    %v114 = vunpack.c.l.b16 %v70
    %v115 = vunpack.c.l.b16 %v71
    %v116 = vunpack.c.l.b16 %v72
    %v117 = vunpack.c.l.b16 %v73
    %v118 = vunpack.c.l.b16 %v74
    %v119 = vunpack.c.l.b16 %v75
    %v120 = vunpack.c.l.b16 %v76
    %v121 = vunpack.c.l.b16 %v77
    %v122 = vunpack.c.l.b16 %v78
    %v123 = vunpack.c.l.b16 %v79
    %v124 = vunpack.c.l.b16 %v80
    %v125 = vunpack.c.l.b16 %v81
    %v126 = vunpack.c.l.b16 %v82
    %v127 = vpack.c.b16 %v112, %v111
    %v128 = vpack.c.b16 %v114, %v113
    %v129 = vpack.c.b16 %v116, %v115
    %v130 = vpack.c.b16 %v118, %v117
    %v131 = vpack.c.b16 %v120, %v119
    %v132 = vpack.c.b16 %v122, %v121
    %v133 = vpack.c.b16 %v124, %v123
    %v134 = vpack.c.b16 %v126, %v125
    %143 = vmatprep.subr.bf16.mxu0 0
    %144 = vmatpush1.bf16.msra.mxu0 %v127
    %145 = vmatprep.subr.bf16.mxu0 0
    %146 = vmatpush1.bf16.msra.mxu0 %v128
    %147 = vmatprep.subr.bf16.mxu0 0
    %148 = vmatpush1.bf16.msra.mxu0 %v129
    %149 = vmatprep.subr.bf16.mxu0 0
    %150 = vmatpush1.bf16.msra.mxu0 %v130
    %151 = vmatprep.subr.bf16.mxu0 0
    %152 = vmatpush1.bf16.msra.mxu0 %v131
    %153 = vmatprep.subr.bf16.mxu0 0
    %154 = vmatpush1.bf16.msra.mxu0 %v132
    %155 = vmatprep.subr.bf16.mxu0 0
    %156 = vmatpush1.bf16.msra.mxu0 %v133
    %157 = vmatprep.subr.bf16.mxu0 0
    %158 = vmatpush1.bf16.msra.mxu0 %v134
    %159 = vmatprep.subr.bf16.mxu0 0
    %160 = vmatpush1.bf16.msra.mxu0 0
    %161 = vmatprep.subr.bf16.mxu0 0
    %162 = vmatpush1.bf16.msra.mxu0 0
    %163 = vmatprep.subr.bf16.mxu0 0
    %164 = vmatpush1.bf16.msra.mxu0 0
    %165 = vmatprep.subr.bf16.mxu0 0
    %166 = vmatpush1.bf16.msra.mxu0 0
    %167 = vmatprep.subr.bf16.mxu0 0
    %168 = vmatpush1.bf16.msra.mxu0 0
    %169 = vmatprep.subr.bf16.mxu0 0
    %170 = vmatpush1.bf16.msra.mxu0 0
    %171 = vmatprep.subr.bf16.mxu0 0
    %172 = vmatpush1.bf16.msra.mxu0 0
    %173 = vmatprep.subr.bf16.mxu0 0
    %174 = vmatpush1.bf16.msra.mxu0 0
    %175 = vmatprep.mubr.bf16.mxu0 0
    %176 = vmatmul.mubr.bf16.gmra.mrb[0].mxu0 %v93
    %v177 = vpop.f32.mrb[0].mxu0
    %v178 = vadd.f32 %v87, %v177
    %v179 = vpop.f32.mrb[0].mxu0
    %v180 = vpop.f32.mrb[0].mxu0
    %v181 = vadd.f32 %v87, %v180
    %v182 = vpop.f32.mrb[0].mxu0
    %183 = vdwg.mxu0
    %v184 = vmax.f32 %v178, 0.0
    %v185 = vmax.f32 %v181, 0.0
    %v186 = vpack.c.bf16 %v185, %v184
    %v187 = vld [vmem:[#allocation4] sm:$0xf]
    %v188 = vld [vmem:[#allocation4 + $0x4] sm:$0xf]
    %v189 = vld [vmem:[#allocation4 + $0x8] sm:$0xf]
    %v190 = vld [vmem:[#allocation4 + $0xc] sm:$0xf]
    %v191 = vld [vmem:[#allocation4 + $0x10] sm:$0xf]
    %v192 = vld [vmem:[#allocation4 + $0x14] sm:$0xf]
    %v193 = vld [vmem:[#allocation4 + $0x18] sm:$0xf]
    %v194 = vld [vmem:[#allocation4 + $0x1c] sm:$0xf]
    %v195 = vld [vmem:[#allocation4 + $0x20] sm:$0xf]
    %v196 = vld [vmem:[#allocation4 + $0x24] sm:$0xf]
    %v197 = vld [vmem:[#allocation4 + $0x28] sm:$0xf]
    %v198 = vld [vmem:[#allocation4 + $0x2c] sm:$0xf]
    %v199 = vld [vmem:[#allocation4 + $0x30] sm:$0xf]
    %v200 = vld [vmem:[#allocation4 + $0x34] sm:$0xf]
    %v201 = vld [vmem:[#allocation4 + $0x38] sm:$0xf]
    %v202 = vld [vmem:[#allocation4 + $0x3c] sm:$0xf]
    %v204 = vlaneseq
    %v205 = vshrl.u32 %v204, 7
    %v206 = vsub.s32 0, %v205
    %v207 = vrot.slane %v63, %v206
    %v225 = vunpack.c.l.b16 %v187
    %v226 = vunpack.c.l.b16 %v188
    %v227 = vunpack.c.l.b16 %v189
    %v228 = vunpack.c.l.b16 %v190
    %v229 = vunpack.c.l.b16 %v191
    %v230 = vunpack.c.l.b16 %v192
    %v231 = vunpack.c.l.b16 %v193
    %v232 = vunpack.c.l.b16 %v194
    %v233 = vunpack.c.l.b16 %v195
    %v234 = vunpack.c.l.b16 %v196
    %v235 = vunpack.c.l.b16 %v197
    %v236 = vunpack.c.l.b16 %v198
    %v237 = vunpack.c.l.b16 %v199
    %v238 = vunpack.c.l.b16 %v200
    %v239 = vunpack.c.l.b16 %v201
    %v240 = vunpack.c.l.b16 %v202
    %v241 = vpack.c.b16 %v226, %v225
    %v242 = vpack.c.b16 %v228, %v227
    %v243 = vpack.c.b16 %v230, %v229
    %v244 = vpack.c.b16 %v232, %v231
    %v245 = vpack.c.b16 %v234, %v233
    %v246 = vpack.c.b16 %v236, %v235
    %v247 = vpack.c.b16 %v238, %v237
    %v248 = vpack.c.b16 %v240, %v239
    %257 = vmatprep.subr.bf16.mxu0 0
    %258 = vmatpush1.bf16.msra.mxu0 %v241
    %259 = vmatprep.subr.bf16.mxu0 0
    %260 = vmatpush1.bf16.msra.mxu0 %v242
    %261 = vmatprep.subr.bf16.mxu0 0
    %262 = vmatpush1.bf16.msra.mxu0 %v243
    %263 = vmatprep.subr.bf16.mxu0 0
    %264 = vmatpush1.bf16.msra.mxu0 %v244
    %265 = vmatprep.subr.bf16.mxu0 0
    %266 = vmatpush1.bf16.msra.mxu0 %v245
    %267 = vmatprep.subr.bf16.mxu0 0
    %268 = vmatpush1.bf16.msra.mxu0 %v246
    %269 = vmatprep.subr.bf16.mxu0 0
    %270 = vmatpush1.bf16.msra.mxu0 %v247
    %271 = vmatprep.subr.bf16.mxu0 0
    %272 = vmatpush1.bf16.msra.mxu0 %v248
    %273 = vmatprep.subr.bf16.mxu0 0
    %274 = vmatpush1.bf16.msra.mxu0 0
    %275 = vmatprep.subr.bf16.mxu0 0
    %276 = vmatpush1.bf16.msra.mxu0 0
    %277 = vmatprep.subr.bf16.mxu0 0
    %278 = vmatpush1.bf16.msra.mxu0 0
    %279 = vmatprep.subr.bf16.mxu0 0
    %280 = vmatpush1.bf16.msra.mxu0 0
    %281 = vmatprep.subr.bf16.mxu0 0
    %282 = vmatpush1.bf16.msra.mxu0 0
    %283 = vmatprep.subr.bf16.mxu0 0
    %284 = vmatpush1.bf16.msra.mxu0 0
    %285 = vmatprep.subr.bf16.mxu0 0
    %286 = vmatpush1.bf16.msra.mxu0 0
    %287 = vmatprep.subr.bf16.mxu0 0
    %288 = vmatpush1.bf16.msra.mxu0 0
    %289 = vmatprep.mubr.bf16.mxu0 0
    %290 = vmatmul.mubr.bf16.gmra.mrb[0].mxu0 %v186
    %v291 = vpop.f32.mrb[0].mxu0
    %v292 = vadd.f32 %v207, %v291
    %v293 = vpop.f32.mrb[0].mxu0
    %v294 = vpop.f32.mrb[0].mxu0
    %v295 = vadd.f32 %v207, %v294
    %v296 = vpop.f32.mrb[0].mxu0
    %297 = vdwg.mxu0
    %v298 = vmax.f32 %v292, 0.0
    %v299 = vmax.f32 %v295, 0.0
    %v300 = vpack.c.bf16 %v299, %v298
    %v301 = vld [vmem:[#allocation6] sm:$0xf]
    %v302 = vld [vmem:[#allocation6 + $0x4] sm:$0xf]
    %v303 = vld [vmem:[#allocation6 + $0x8] sm:$0xf]
    %v304 = vld [vmem:[#allocation6 + $0xc] sm:$0xf]
    %v305 = vld [vmem:[#allocation6 + $0x10] sm:$0xf]
    %v306 = vld [vmem:[#allocation6 + $0x14] sm:$0xf]
    %v307 = vld [vmem:[#allocation6 + $0x18] sm:$0xf]
    %v308 = vld [vmem:[#allocation6 + $0x1c] sm:$0xf]
    %v309 = vld [vmem:[#allocation6 + $0x20] sm:$0xf]
    %v310 = vld [vmem:[#allocation6 + $0x24] sm:$0xf]
    %v311 = vld [vmem:[#allocation6 + $0x28] sm:$0xf]
    %v312 = vld [vmem:[#allocation6 + $0x2c] sm:$0xf]
    %v313 = vld [vmem:[#allocation6 + $0x30] sm:$0xf]
    %v314 = vld [vmem:[#allocation6 + $0x34] sm:$0xf]
    %v315 = vld [vmem:[#allocation6 + $0x38] sm:$0xf]
    %v316 = vld [vmem:[#allocation6 + $0x3c] sm:$0xf]
    %v318 = vlaneseq
    %v319 = vshrl.u32 %v318, 7
    %v320 = vsub.s32 0, %v319
    %v321 = vrot.slane %v64, %v320
    %v339 = vunpack.c.l.b16 %v301
    %v340 = vunpack.c.l.b16 %v302
    %v341 = vunpack.c.l.b16 %v303
    %v342 = vunpack.c.l.b16 %v304
    %v343 = vunpack.c.l.b16 %v305
    %v344 = vunpack.c.l.b16 %v306
    %v345 = vunpack.c.l.b16 %v307
    %v346 = vunpack.c.l.b16 %v308
    %v347 = vunpack.c.l.b16 %v309
    %v348 = vunpack.c.l.b16 %v310
    %v349 = vunpack.c.l.b16 %v311
    %v350 = vunpack.c.l.b16 %v312
    %v351 = vunpack.c.l.b16 %v313
    %v352 = vunpack.c.l.b16 %v314
    %v353 = vunpack.c.l.b16 %v315
    %v354 = vunpack.c.l.b16 %v316
    %v355 = vpack.c.b16 %v340, %v339
    %v356 = vpack.c.b16 %v342, %v341
    %v357 = vpack.c.b16 %v344, %v343
    %v358 = vpack.c.b16 %v346, %v345
    %v359 = vpack.c.b16 %v348, %v347
    %v360 = vpack.c.b16 %v350, %v349
    %v361 = vpack.c.b16 %v352, %v351
    %v362 = vpack.c.b16 %v354, %v353
    %371 = vmatprep.subr.bf16.mxu0 0
    %372 = vmatpush1.bf16.msra.mxu0 %v355
    %373 = vmatprep.subr.bf16.mxu0 0
    %374 = vmatpush1.bf16.msra.mxu0 %v356
    %375 = vmatprep.subr.bf16.mxu0 0
    %376 = vmatpush1.bf16.msra.mxu0 %v357
    %377 = vmatprep.subr.bf16.mxu0 0
    %378 = vmatpush1.bf16.msra.mxu0 %v358
    %379 = vmatprep.subr.bf16.mxu0 0
    %380 = vmatpush1.bf16.msra.mxu0 %v359
    %381 = vmatprep.subr.bf16.mxu0 0
    %382 = vmatpush1.bf16.msra.mxu0 %v360
    %383 = vmatprep.subr.bf16.mxu0 0
    %384 = vmatpush1.bf16.msra.mxu0 %v361
    %385 = vmatprep.subr.bf16.mxu0 0
    %386 = vmatpush1.bf16.msra.mxu0 %v362
    %387 = vmatprep.subr.bf16.mxu0 0
    %388 = vmatpush1.bf16.msra.mxu0 0
    %389 = vmatprep.subr.bf16.mxu0 0
    %390 = vmatpush1.bf16.msra.mxu0 0
    %391 = vmatprep.subr.bf16.mxu0 0
    %392 = vmatpush1.bf16.msra.mxu0 0
    %393 = vmatprep.subr.bf16.mxu0 0
    %394 = vmatpush1.bf16.msra.mxu0 0
    %395 = vmatprep.subr.bf16.mxu0 0
    %396 = vmatpush1.bf16.msra.mxu0 0
    %397 = vmatprep.subr.bf16.mxu0 0
    %398 = vmatpush1.bf16.msra.mxu0 0
    %399 = vmatprep.subr.bf16.mxu0 0
    %400 = vmatpush1.bf16.msra.mxu0 0
    %401 = vmatprep.subr.bf16.mxu0 0
    %402 = vmatpush1.bf16.msra.mxu0 0
    %403 = vmatprep.mubr.bf16.mxu0 0
    %404 = vmatmul.mubr.bf16.gmra.mrb[0].mxu0 %v300
    %v405 = vpop.f32.mrb[0].mxu0
    %v406 = vadd.f32 %v321, %v405
    %v407 = vpop.f32.mrb[0].mxu0
    %v408 = vpop.f32.mrb[0].mxu0
    %v409 = vadd.f32 %v321, %v408
    %v410 = vpop.f32.mrb[0].mxu0
    %411 = vdwg.mxu0
    %v412 = vpack.c.bf16 %v409, %v406
    %v414 = vunpack.c.l.b16 %v412
    %v415 = vunpack.c.h.b16 %v412
    %v416 = vpack.c.b16 %v414, %v414
    %v417 = vpack.c.b16 %v415, %v415
    %420 = vst [vmem:[%s5] sm:$0xf] %v416
    %421 = vst [vmem:[%s5 + $0x4] sm:$0xf] %v417
    // Predicated region
    $region34: #{neural_net_forward.1} parent=1 // pred_check
      _
    $region35: #{neural_net_forward.1} parent=1 // pred_check_branch
      %423 = sbr.rel (0) target = $region37
    $region36: #{neural_net_forward.1} parent=1 // pred_region
      _
    $region37: #{neural_net_forward.1} parent=1 // pred_fallthru
      _
    // Predicated region
    $region38: #{neural_net_forward.1} parent=1 // pred_check
      _
    $region39: #{neural_net_forward.1} parent=1 // pred_check_branch
      %425 = sbr.rel (0) target = $region41
    $region40: #{neural_net_forward.1} parent=1 // pred_region
      _
    $region41: #{neural_net_forward.1} parent=1 // pred_fallthru
      _
    %426 = vsyncpa [#allocation3], 1
    %427 = vsyncpa [#allocation5], 1

</llo_original>
